<compile_context>
chip_gen: v7x
topology: tpu7x:2x2x1
jax: 0.10.0
libtpu: 0.0.40
codegen_flags: <defaults>
</compile_context>

<pallas_src>
import functools

import jax
import jax.numpy as jnp
from jax.experimental import pallas as pl
from jax.experimental.pallas import tpu as pltpu


def _round_up(n, m):
    return (n + m - 1) // m * m


def _mlp_kernel(c, t):
    c = float(c)
    t = float(t)

    def kernel(x_ref, w1_ref, b1_ref, w2_ref, b2_ref, w3_ref, b3_ref, o_ref):
        # x streamed as f32 (no wrapper pre-pass); cast to bf16 just before the
        # MXU feed -- the VPU cast hides under the x DMA.
        x = x_ref[...].astype(jnp.bfloat16)

        # ---- layer 1: bf16 MXU, f32 accumulate, tanh (see chebyshev note)
        h = jnp.tanh(
            jnp.dot(x, w1_ref[...], preferred_element_type=jnp.float32)
            + b1_ref[...])

        # ---- layer 2: bf16 MXU, f32 accumulate, sigmoid via EUP exp + rcp
        u = jnp.dot(h.astype(jnp.bfloat16), w2_ref[...],
                    preferred_element_type=jnp.float32) + b2_ref[...]
        u = pl.reciprocal(1.0 + jnp.exp(-u), approx=True)

        # ---- Poincare ball layer: curvature-c Mobius addition, t-blend.
        # z = (1-t)*h + t*mob, mob = (A*h + B*u)/den -> fused coefficients so
        # only h, u, z remain as live full-tile temporaries.
        xy = jnp.sum(h * u, axis=-1, keepdims=True)      # <h, u>
        xx = jnp.sum(h * h, axis=-1, keepdims=True)      # ||h||^2
        yy = jnp.sum(u * u, axis=-1, keepdims=True)      # ||u||^2
        den_inv = pl.reciprocal(
            1.0 + 2.0 * c * xy + (c * c) * xx * yy, approx=True)
        coef_h = (1.0 - t) + t * (1.0 + 2.0 * c * xy + c * yy) * den_inv
        coef_u = t * (1.0 - c * xx) * den_inv
        z = coef_h * h + coef_u * u

        # ---- cheap NaN guard: h/u are bounded, so any NaN must show up in the
        # (TB,1) coefficients (NaN in h/u also propagates into them via the
        # row reductions).  Avoids a full (TB,128) isnan + any-reduce.
        nan_hit = jnp.any(jnp.isnan(coef_h)) | jnp.any(jnp.isnan(coef_u))
        z = jnp.where(nan_hit, h, z)

        # ---- output layer: bf16 MXU, f32 accumulate, lane-dense 128-wide store
        o_ref[...] = jnp.dot(z.astype(jnp.bfloat16), w3_ref[...],
                             preferred_element_type=jnp.float32) + b3_ref[...]

    return kernel


def prepare_params(params, out_pad=128):
    """One-time (hoisted) weight prep: bf16 MXU operands, f32 row-vector biases,
    lane-dense padding of the output projection.  Call once, reuse per step."""
    hid = params["w1"].shape[1]
    out_dim = params["w3"].shape[1]
    out_pad = _round_up(max(out_dim, out_pad), 128)

    w3 = jnp.zeros((hid, out_pad), jnp.bfloat16)
    w3 = w3.at[:, :out_dim].set(params["w3"].astype(jnp.bfloat16))
    b3 = jnp.zeros((1, out_pad), jnp.float32)
    b3 = b3.at[:, :out_dim].set(
        params["b3"].reshape(1, out_dim).astype(jnp.float32))

    prepared = {
        "w1": params["w1"].astype(jnp.bfloat16),                    # (in, hid)
        "b1": params["b1"].reshape(1, hid).astype(jnp.float32),
        "w2": params["w2"].astype(jnp.bfloat16),                    # (hid, hid)
        "b2": params["b2"].reshape(1, hid).astype(jnp.float32),
        "w3": w3,                                                   # (hid, 128)
        "b3": b3,                                                   # (1, 128)
    }
    return prepared, out_dim


@functools.partial(jax.jit, static_argnames=("out_dim", "c", "t", "tb"))
def conditional_chebyshev_mlp(x, prepared, out_dim, c=0.001, t=0.7, tb=1024):
    """x: (B, C, H, W) or (B, in_dim) f32.  prepared: output of prepare_params."""
    B = x.shape[0]
    x2 = x.reshape(B, -1).astype(jnp.float32)
    in_dim = x2.shape[1]
    hid = prepared["w1"].shape[1]
    out_pad = prepared["w3"].shape[1]

    # Batch tile: biggest that fits every generation's default scoped VMEM.
    TB = min(tb, _round_up(B, 8))
    B_PAD = _round_up(B, TB)
    if B_PAD != B:
        # cheap row-only zero pad (no dtype change, no lane pad); padded rows
        # produce finite values so they cannot trip the NaN guard.
        x2 = jnp.pad(x2, ((0, B_PAD - B), (0, 0)))

    out = pl.pallas_call(
        _mlp_kernel(c, t),
        out_shape=jax.ShapeDtypeStruct((B_PAD, out_pad), jnp.float32),
        grid=(B_PAD // TB,),
        in_specs=[
            pl.BlockSpec((TB, in_dim), lambda i: (i, 0)),    # x: streamed f32
            pl.BlockSpec((in_dim, hid), lambda i: (0, 0)),   # w1: VMEM-resident
            pl.BlockSpec((1, hid), lambda i: (0, 0)),        # b1
            pl.BlockSpec((hid, hid), lambda i: (0, 0)),      # w2
            pl.BlockSpec((1, hid), lambda i: (0, 0)),        # b2
            pl.BlockSpec((hid, out_pad), lambda i: (0, 0)),  # w3 (lane-padded)
            pl.BlockSpec((1, out_pad), lambda i: (0, 0)),    # b3 (lane-padded)
        ],
        out_specs=pl.BlockSpec((TB, out_pad), lambda i: (i, 0)),
        compiler_params=pltpu.CompilerParams(
            dimension_semantics=("parallel",)),
    )(x2, prepared["w1"], prepared["b1"], prepared["w2"], prepared["b2"],
      prepared["w3"], prepared["b3"])

    return out[:B, :out_dim]


def init_params(key, in_dim=784, hid=128, out_dim=10):
    k1, k2, k3 = jax.random.split(key, 3)
    return {
        "w1": (jax.random.normal(k1, (in_dim, hid)) * 0.01).astype(jnp.float32),
        "b1": jnp.zeros((hid,), jnp.float32),
        "w2": (jax.random.normal(k2, (hid, hid)) * 0.01).astype(jnp.float32),
        "b2": jnp.zeros((hid,), jnp.float32),
        "w3": (jax.random.normal(k3, (hid, out_dim)) * 0.01).astype(jnp.float32),
        "b3": jnp.zeros((out_dim,), jnp.float32),
    }


def _reference(x, params, c=0.001, t=0.7):
    """Pure-JAX f32 reference mirroring the PyTorch module (exact divides,
    whole-tensor NaN guard, chebyshev branch always falls back to tanh)."""
    B = x.shape[0]
    x2 = x.reshape(B, -1).astype(jnp.float32)
    h = jnp.tanh(x2 @ params["w1"] + params["b1"].reshape(1, -1))
    u = h @ params["w2"] + params["b2"].reshape(1, -1)
    u = 1.0 / (1.0 + jnp.exp(-u))
    xy = jnp.sum(h * u, axis=-1, keepdims=True)
    xx = jnp.sum(h * h, axis=-1, keepdims=True)
    yy = jnp.sum(u * u, axis=-1, keepdims=True)
    den = 1.0 + 2.0 * c * xy + (c * c) * xx * yy
    mob = ((1.0 + 2.0 * c * xy + c * yy) * h + (1.0 - c * xx) * u) / den
    z = (1.0 - t) * h + t * mob
    z = jnp.where(jnp.any(jnp.isnan(z)), h, z)
    return z @ params["w3"] + params["b3"].reshape(1, -1)


if __name__ == "__main__":
    key = jax.random.PRNGKey(0)
    kx, kp = jax.random.split(key)

    B, in_dim, hid, out_dim = 8, 784, 128, 10
    x = jax.random.normal(kx, (B, 1, 28, 28), dtype=jnp.float32)  # NCHW
    params = init_params(kp, in_dim=in_dim, hid=hid, out_dim=out_dim)

    prepared, od = prepare_params(params)            # hoisted one-time prep
    out = conditional_chebyshev_mlp(x, prepared, od, c=0.001, t=0.7)
    out = jax.block_until_ready(out)

    ref = _reference(x, params, c=0.001, t=0.7)
    assert out.shape == (B, out_dim)
    assert bool(jnp.allclose(out, ref, atol=3e-3, rtol=3e-2)), \
        "mismatch vs f32 reference"
    print("KERNEL_OK")
</pallas_src>

<mosaic_0001>
module attributes {stable_mosaic.version = 11 : i64} {
  func.func @kernel(%arg0: i32, %arg1: memref<8x784xf32, #tpu.memory_space<vmem>>, %arg2: memref<784x128xbf16, #tpu.memory_space<vmem>>, %arg3: memref<1x128xf32, #tpu.memory_space<vmem>>, %arg4: memref<128x128xbf16, #tpu.memory_space<vmem>>, %arg5: memref<1x128xf32, #tpu.memory_space<vmem>>, %arg6: memref<128x128xbf16, #tpu.memory_space<vmem>>, %arg7: memref<1x128xf32, #tpu.memory_space<vmem>>, %arg8: memref<8x128xf32, #tpu.memory_space<vmem>>) attributes {dimension_semantics = [#tpu.dimension_semantics<parallel>], iteration_bounds = array<i64: 1>, scalar_prefetch = 0 : i64, scratch_operands = 0 : i64, tpu.core_type = #tpu.core_type<tc>, window_params = [{transform_indices = @transform_0, window_bounds = array<i64: 8, 784>}, {pipeline_mode = #tpu.pipeline_mode<synchronous>, transform_indices = @transform_1, window_bounds = array<i64: 784, 128>}, {pipeline_mode = #tpu.pipeline_mode<synchronous>, transform_indices = @transform_2, window_bounds = array<i64: 1, 128>}, {pipeline_mode = #tpu.pipeline_mode<synchronous>, transform_indices = @transform_3, window_bounds = array<i64: 128, 128>}, {pipeline_mode = #tpu.pipeline_mode<synchronous>, transform_indices = @transform_4, window_bounds = array<i64: 1, 128>}, {pipeline_mode = #tpu.pipeline_mode<synchronous>, transform_indices = @transform_5, window_bounds = array<i64: 128, 128>}, {pipeline_mode = #tpu.pipeline_mode<synchronous>, transform_indices = @transform_6, window_bounds = array<i64: 1, 128>}, {transform_indices = @transform_7, window_bounds = array<i64: 8, 128>}]} {
    %c0 = arith.constant 0 : index
    %c0_0 = arith.constant 0 : index
    %0 = vector.load %arg1[%c0, %c0_0] : memref<8x784xf32, #tpu.memory_space<vmem>>, vector<8x784xf32>
    %1 = arith.truncf %0 : vector<8x784xf32> to vector<8x784xbf16>
    %c0_1 = arith.constant 0 : index
    %c0_2 = arith.constant 0 : index
    %2 = vector.load %arg2[%c0_1, %c0_2] : memref<784x128xbf16, #tpu.memory_space<vmem>>, vector<784x128xbf16>
    %cst = arith.constant dense<0.000000e+00> : vector<8x128xf32>
    %3 = tpu.matmul %1, %2, %cst {dimension_numbers = #tpu.dot_dimension_numbers<[1], [0], [0], [1], [0, 0, 1, 1], [], []>} : vector<8x784xbf16>, vector<784x128xbf16>, vector<8x128xf32> -> vector<8x128xf32>
    %c0_3 = arith.constant 0 : index
    %c0_4 = arith.constant 0 : index
    %4 = vector.load %arg3[%c0_3, %c0_4] : memref<1x128xf32, #tpu.memory_space<vmem>>, vector<1x128xf32>
    %5 = vector.broadcast %4 : vector<1x128xf32> to vector<8x128xf32>
    %6 = arith.addf %3, %5 : vector<8x128xf32>
    %7 = math.tanh %6 : vector<8x128xf32>
    %8 = arith.truncf %7 : vector<8x128xf32> to vector<8x128xbf16>
    %c0_5 = arith.constant 0 : index
    %c0_6 = arith.constant 0 : index
    %9 = vector.load %arg4[%c0_5, %c0_6] : memref<128x128xbf16, #tpu.memory_space<vmem>>, vector<128x128xbf16>
    %cst_7 = arith.constant dense<0.000000e+00> : vector<8x128xf32>
    %10 = tpu.matmul %8, %9, %cst_7 {dimension_numbers = #tpu.dot_dimension_numbers<[1], [0], [0], [1], [0, 0, 1, 1], [], []>} : vector<8x128xbf16>, vector<128x128xbf16>, vector<8x128xf32> -> vector<8x128xf32>
    %c0_8 = arith.constant 0 : index
    %c0_9 = arith.constant 0 : index
    %11 = vector.load %arg5[%c0_8, %c0_9] : memref<1x128xf32, #tpu.memory_space<vmem>>, vector<1x128xf32>
    %12 = vector.broadcast %11 : vector<1x128xf32> to vector<8x128xf32>
    %13 = arith.addf %10, %12 : vector<8x128xf32>
    %cst_10 = arith.constant 0.000000e+00 : f32
    %14 = vector.broadcast %cst_10 : f32 to vector<8x128xf32>
    %15 = arith.subf %14, %13 : vector<8x128xf32>
    %16 = math.exp %15 : vector<8x128xf32>
    %cst_11 = arith.constant 1.000000e+00 : f32
    %17 = vector.broadcast %cst_11 : f32 to vector<8x128xf32>
    %18 = arith.addf %17, %16 : vector<8x128xf32>
    %19 = tpu.reciprocal %18 {approx = true} : vector<8x128xf32> -> vector<8x128xf32>
    %20 = arith.mulf %7, %19 : vector<8x128xf32>
    %cst_12 = arith.constant dense<0.000000e+00> : vector<8xf32>
    %21 = vector.multi_reduction <add>, %20, %cst_12 [1] : vector<8x128xf32> to vector<8xf32>
    %22 = vector.shape_cast %21 : vector<8xf32> to vector<8x1xf32>
    %23 = arith.mulf %7, %7 : vector<8x128xf32>
    %cst_13 = arith.constant dense<0.000000e+00> : vector<8xf32>
    %24 = vector.multi_reduction <add>, %23, %cst_13 [1] : vector<8x128xf32> to vector<8xf32>
    %25 = vector.shape_cast %24 : vector<8xf32> to vector<8x1xf32>
    %26 = arith.mulf %19, %19 : vector<8x128xf32>
    %cst_14 = arith.constant dense<0.000000e+00> : vector<8xf32>
    %27 = vector.multi_reduction <add>, %26, %cst_14 [1] : vector<8x128xf32> to vector<8xf32>
    %28 = vector.shape_cast %27 : vector<8xf32> to vector<8x1xf32>
    %cst_15 = arith.constant 2.000000e-03 : f32
    %29 = vector.broadcast %cst_15 : f32 to vector<8x1xf32>
    %30 = arith.mulf %29, %22 : vector<8x1xf32>
    %cst_16 = arith.constant 1.000000e+00 : f32
    %31 = vector.broadcast %cst_16 : f32 to vector<8x1xf32>
    %32 = arith.addf %31, %30 : vector<8x1xf32>
    %cst_17 = arith.constant 9.99999997E-7 : f32
    %33 = vector.broadcast %cst_17 : f32 to vector<8x1xf32>
    %34 = arith.mulf %33, %25 : vector<8x1xf32>
    %35 = arith.mulf %34, %28 : vector<8x1xf32>
    %36 = arith.addf %32, %35 : vector<8x1xf32>
    %37 = tpu.reciprocal %36 {approx = true} : vector<8x1xf32> -> vector<8x1xf32>
    %cst_18 = arith.constant 2.000000e-03 : f32
    %38 = vector.broadcast %cst_18 : f32 to vector<8x1xf32>
    %39 = arith.mulf %38, %22 : vector<8x1xf32>
    %cst_19 = arith.constant 1.000000e+00 : f32
    %40 = vector.broadcast %cst_19 : f32 to vector<8x1xf32>
    %41 = arith.addf %40, %39 : vector<8x1xf32>
    %cst_20 = arith.constant 1.000000e-03 : f32
    %42 = vector.broadcast %cst_20 : f32 to vector<8x1xf32>
    %43 = arith.mulf %42, %28 : vector<8x1xf32>
    %44 = arith.addf %41, %43 : vector<8x1xf32>
    %cst_21 = arith.constant 0.699999988 : f32
    %45 = vector.broadcast %cst_21 : f32 to vector<8x1xf32>
    %46 = arith.mulf %45, %44 : vector<8x1xf32>
    %47 = arith.mulf %46, %37 : vector<8x1xf32>
    %cst_22 = arith.constant 3.000000e-01 : f32
    %48 = vector.broadcast %cst_22 : f32 to vector<8x1xf32>
    %49 = arith.addf %48, %47 : vector<8x1xf32>
    %cst_23 = arith.constant 1.000000e-03 : f32
    %50 = vector.broadcast %cst_23 : f32 to vector<8x1xf32>
    %51 = arith.mulf %50, %25 : vector<8x1xf32>
    %cst_24 = arith.constant 1.000000e+00 : f32
    %52 = vector.broadcast %cst_24 : f32 to vector<8x1xf32>
    %53 = arith.subf %52, %51 : vector<8x1xf32>
    %cst_25 = arith.constant 0.699999988 : f32
    %54 = vector.broadcast %cst_25 : f32 to vector<8x1xf32>
    %55 = arith.mulf %54, %53 : vector<8x1xf32>
    %56 = arith.mulf %55, %37 : vector<8x1xf32>
    %57 = vector.broadcast %49 : vector<8x1xf32> to vector<8x128xf32>
    %58 = arith.mulf %57, %7 : vector<8x128xf32>
    %59 = vector.broadcast %56 : vector<8x1xf32> to vector<8x128xf32>
    %60 = arith.mulf %59, %19 : vector<8x128xf32>
    %61 = arith.addf %58, %60 : vector<8x128xf32>
    %62 = arith.cmpf one, %49, %49 : vector<8x1xf32>
    %cst_26 = arith.constant 1.000000e+00 : f32
    %cst_27 = arith.constant 0.000000e+00 : f32
    %63 = vector.broadcast %cst_26 : f32 to vector<8x1xf32>
    %64 = vector.broadcast %cst_27 : f32 to vector<8x1xf32>
    %65 = arith.select %62, %63, %64 : vector<8x1xi1>, vector<8x1xf32>
    %66 = vector.shape_cast %65 : vector<8x1xf32> to vector<1x8x1xf32>
    %cst_28 = arith.constant dense<0xFF800000> : vector<1xf32>
    %67 = vector.multi_reduction <maximumf>, %66, %cst_28 [1, 2] : vector<1x8x1xf32> to vector<1xf32>
    %68 = vector.shape_cast %67 : vector<1xf32> to vector<1x1x1xf32>
    %69 = vector.extract %68[0, 0, 0] : f32 from vector<1x1x1xf32>
    %cst_29 = arith.constant 0.000000e+00 : f32
    %70 = arith.cmpf ogt, %69, %cst_29 : f32
    %71 = arith.cmpf one, %56, %56 : vector<8x1xf32>
    %cst_30 = arith.constant 1.000000e+00 : f32
    %cst_31 = arith.constant 0.000000e+00 : f32
    %72 = vector.broadcast %cst_30 : f32 to vector<8x1xf32>
    %73 = vector.broadcast %cst_31 : f32 to vector<8x1xf32>
    %74 = arith.select %71, %72, %73 : vector<8x1xi1>, vector<8x1xf32>
    %75 = vector.shape_cast %74 : vector<8x1xf32> to vector<1x8x1xf32>
    %cst_32 = arith.constant dense<0xFF800000> : vector<1xf32>
    %76 = vector.multi_reduction <maximumf>, %75, %cst_32 [1, 2] : vector<1x8x1xf32> to vector<1xf32>
    %77 = vector.shape_cast %76 : vector<1xf32> to vector<1x1x1xf32>
    %78 = vector.extract %77[0, 0, 0] : f32 from vector<1x1x1xf32>
    %cst_33 = arith.constant 0.000000e+00 : f32
    %79 = arith.cmpf ogt, %78, %cst_33 : f32
    %80 = arith.ori %70, %79 : i1
    %81 = arith.select %80, %7, %61 : vector<8x128xf32>
    %82 = arith.truncf %81 : vector<8x128xf32> to vector<8x128xbf16>
    %c0_34 = arith.constant 0 : index
    %c0_35 = arith.constant 0 : index
    %83 = vector.load %arg6[%c0_34, %c0_35] : memref<128x128xbf16, #tpu.memory_space<vmem>>, vector<128x128xbf16>
    %cst_36 = arith.constant dense<0.000000e+00> : vector<8x128xf32>
    %84 = tpu.matmul %82, %83, %cst_36 {dimension_numbers = #tpu.dot_dimension_numbers<[1], [0], [0], [1], [0, 0, 1, 1], [], []>} : vector<8x128xbf16>, vector<128x128xbf16>, vector<8x128xf32> -> vector<8x128xf32>
    %c0_37 = arith.constant 0 : index
    %c0_38 = arith.constant 0 : index
    %85 = vector.load %arg7[%c0_37, %c0_38] : memref<1x128xf32, #tpu.memory_space<vmem>>, vector<1x128xf32>
    %86 = vector.broadcast %85 : vector<1x128xf32> to vector<8x128xf32>
    %87 = arith.addf %84, %86 : vector<8x128xf32>
    %c0_39 = arith.constant 0 : index
    %c0_40 = arith.constant 0 : index
    %88 = vector.load %arg8[%c0_39, %c0_40] : memref<8x128xf32, #tpu.memory_space<vmem>>, vector<8x128xf32>
    tpu.vector_store %arg8[%c0_39, %c0_40], %87 {strides = array<i32>} : memref<8x128xf32, #tpu.memory_space<vmem>>, vector<8x128xf32>,
    return
  }
  func.func @transform_0(%arg0: i32) -> (i32, i32) {
    %c0_i32 = arith.constant 0 : i32
    %c0_i32_0 = arith.constant 0 : i32
    return %arg0, %c0_i32 : i32, i32
  }
  func.func @transform_1(%arg0: i32) -> (i32, i32) {
    %c0_i32 = arith.constant 0 : i32
    %c0_i32_0 = arith.constant 0 : i32
    %c0_i32_1 = arith.constant 0 : i32
    return %c0_i32, %c0_i32_0 : i32, i32
  }
  func.func @transform_2(%arg0: i32) -> (i32, i32) {
    %c0_i32 = arith.constant 0 : i32
    %c0_i32_0 = arith.constant 0 : i32
    %c0_i32_1 = arith.constant 0 : i32
    return %c0_i32, %c0_i32_0 : i32, i32
  }
  func.func @transform_3(%arg0: i32) -> (i32, i32) {
    %c0_i32 = arith.constant 0 : i32
    %c0_i32_0 = arith.constant 0 : i32
    %c0_i32_1 = arith.constant 0 : i32
    return %c0_i32, %c0_i32_0 : i32, i32
  }
  func.func @transform_4(%arg0: i32) -> (i32, i32) {
    %c0_i32 = arith.constant 0 : i32
    %c0_i32_0 = arith.constant 0 : i32
    %c0_i32_1 = arith.constant 0 : i32
    return %c0_i32, %c0_i32_0 : i32, i32
  }
  func.func @transform_5(%arg0: i32) -> (i32, i32) {
    %c0_i32 = arith.constant 0 : i32
    %c0_i32_0 = arith.constant 0 : i32
    %c0_i32_1 = arith.constant 0 : i32
    return %c0_i32, %c0_i32_0 : i32, i32
  }
  func.func @transform_6(%arg0: i32) -> (i32, i32) {
    %c0_i32 = arith.constant 0 : i32
    %c0_i32_0 = arith.constant 0 : i32
    %c0_i32_1 = arith.constant 0 : i32
    return %c0_i32, %c0_i32_0 : i32, i32
  }
  func.func @transform_7(%arg0: i32) -> (i32, i32) {
    %c0_i32 = arith.constant 0 : i32
    %c0_i32_0 = arith.constant 0 : i32
    return %arg0, %c0_i32 : i32, i32
  }
}

</mosaic_0001>

<llo_original>
// kernel: conditional_chebyshev_mlp.1
$region0: #{conditional_chebyshev_mlp.1}
  #allocation0 [shape = 'u32[]', space=smem, size = 0x4, offset = 0x4, fixed_abs, tag = 'smem constant byte address 0x4 - core index']
  #allocation1 [shape = 'u32[144,128]{1,0:T(1,128)}', space=vmem, size = 0x12000, scoped, tag = 'internal scratch']
  %s0 = inlined_call_operand.vmem [shape: f32[8,784], index: 0, kind: input, shape index: {}]
  %s1 = inlined_call_operand.vmem [shape: bf16[784,128], index: 1, kind: input, shape index: {}]
  %s2 = inlined_call_operand.vmem [shape: f32[1,128], index: 2, kind: input, shape index: {}]
  %s3 = inlined_call_operand.vmem [shape: bf16[128,128], index: 3, kind: input, shape index: {}]
  %s4 = inlined_call_operand.vmem [shape: f32[1,128], index: 4, kind: input, shape index: {}]
  %s5 = inlined_call_operand.vmem [shape: bf16[128,128], index: 5, kind: input, shape index: {}]
  %s6 = inlined_call_operand.vmem [shape: f32[1,128], index: 6, kind: input, shape index: {}]
  %s7 = inlined_call_operand.hbm [shape: f32[8,128], index: 7, kind: output, shape index: {}]
  %s8 = sld [smem:[#allocation0]]
  $region38: #{conditional_chebyshev_mlp.1} parent=0
    _
  %s10 = ssub.s32 1, %s8
  %s11 = scalar_select 0, %s10, %s8
  $region1: #{conditional_chebyshev_mlp.1} parent=0
    #allocation2 [shape = 'u8[4096]{0}', space=vmem, size = 0x1000, scoped, tag = 'output window, operand 0, single buffered']
    #allocation3 [shape = 's32[1]{0}', space=sflag, size = 0x4, scoped, tag = 'scoped memory for conditional_chebyshev_mlp.1']
    %12 = vsyncpa [#allocation3], 0
    // Predicated region
    $region2: #{conditional_chebyshev_mlp.1} parent=1 // pred_check
      _
    $region3: #{conditional_chebyshev_mlp.1} parent=1 // pred_check_branch
      %14 = sbr.rel (0) target = $region5
    $region4: #{conditional_chebyshev_mlp.1} parent=1 // pred_region
      _
    $region5: #{conditional_chebyshev_mlp.1} parent=1 // pred_fallthru
      _
    // Predicated region
    $region6: #{conditional_chebyshev_mlp.1} parent=1 // pred_check
      _
    $region7: #{conditional_chebyshev_mlp.1} parent=1 // pred_check_branch
      %16 = sbr.rel (0) target = $region9
    $region8: #{conditional_chebyshev_mlp.1} parent=1 // pred_region
      _
    $region9: #{conditional_chebyshev_mlp.1} parent=1 // pred_fallthru
      _
    // Predicated region
    $region10: #{conditional_chebyshev_mlp.1} parent=1 // pred_check
      _
    $region11: #{conditional_chebyshev_mlp.1} parent=1 // pred_check_branch
      %18 = sbr.rel (0) target = $region13
    $region12: #{conditional_chebyshev_mlp.1} parent=1 // pred_region
      _
    $region13: #{conditional_chebyshev_mlp.1} parent=1 // pred_fallthru
      _
    // Predicated region
    $region14: #{conditional_chebyshev_mlp.1} parent=1 // pred_check
      _
    $region15: #{conditional_chebyshev_mlp.1} parent=1 // pred_check_branch
      %20 = sbr.rel (0) target = $region17
    $region16: #{conditional_chebyshev_mlp.1} parent=1 // pred_region
      _
    $region17: #{conditional_chebyshev_mlp.1} parent=1 // pred_fallthru
      _
    // Predicated region
    $region18: #{conditional_chebyshev_mlp.1} parent=1 // pred_check
      _
    $region19: #{conditional_chebyshev_mlp.1} parent=1 // pred_check_branch
      %22 = sbr.rel (0) target = $region21
    $region20: #{conditional_chebyshev_mlp.1} parent=1 // pred_region
      _
    $region21: #{conditional_chebyshev_mlp.1} parent=1 // pred_fallthru
      _
    // Predicated region
    $region22: #{conditional_chebyshev_mlp.1} parent=1 // pred_check
      _
    $region23: #{conditional_chebyshev_mlp.1} parent=1 // pred_check_branch
      %24 = sbr.rel (0) target = $region25
    $region24: #{conditional_chebyshev_mlp.1} parent=1 // pred_region
      _
    $region25: #{conditional_chebyshev_mlp.1} parent=1 // pred_fallthru
      _
    // Predicated region
    $region26: #{conditional_chebyshev_mlp.1} parent=1 // pred_check
      _
    $region27: #{conditional_chebyshev_mlp.1} parent=1 // pred_check_branch
      %26 = sbr.rel (0) target = $region29
    $region28: #{conditional_chebyshev_mlp.1} parent=1 // pred_region
      _
    $region29: #{conditional_chebyshev_mlp.1} parent=1 // pred_fallthru
      _
    %v28 = vld [vmem:[%s0] sm:$0xff]
    %v29 = vld [vmem:[%s0 + $0x8] sm:$0xff]
    %v30 = vld [vmem:[%s0 + $0x10] sm:$0xff]
    %v31 = vld [vmem:[%s0 + $0x18] sm:$0xff]
    %v32 = vld [vmem:[%s0 + $0x20] sm:$0xff]
    %v33 = vld [vmem:[%s0 + $0x28] sm:$0xff]
    %v34 = vld [vmem:[%s0 + $0x30] sm:$0xff]
    %v35 = vpack.c.bf16 %v28, %v28
    %v36 = vpack.c.bf16 %v29, %v29
    %v37 = vpack.c.bf16 %v30, %v30
    %v38 = vpack.c.bf16 %v31, %v31
    %v39 = vpack.c.bf16 %v32, %v32
    %v40 = vpack.c.bf16 %v33, %v33
    %v41 = vpack.c.bf16 %v34, %v34
    %v42 = vld [vmem:[%s1] sm:$0xf]
    %v43 = vld [vmem:[%s1 + $0x4] sm:$0xf]
    %v44 = vld [vmem:[%s1 + $0x8] sm:$0xf]
    %v45 = vld [vmem:[%s1 + $0xc] sm:$0xf]
    %v46 = vld [vmem:[%s1 + $0x10] sm:$0xf]
    %v47 = vld [vmem:[%s1 + $0x14] sm:$0xf]
    %v48 = vld [vmem:[%s1 + $0x18] sm:$0xf]
    %v49 = vld [vmem:[%s1 + $0x1c] sm:$0xf]
    %v50 = vld [vmem:[%s1 + $0x20] sm:$0xf]
    %v51 = vld [vmem:[%s1 + $0x24] sm:$0xf]
    %v52 = vld [vmem:[%s1 + $0x28] sm:$0xf]
    %v53 = vld [vmem:[%s1 + $0x2c] sm:$0xf]
    %v54 = vld [vmem:[%s1 + $0x30] sm:$0xf]
    %v55 = vld [vmem:[%s1 + $0x34] sm:$0xf]
    %v56 = vld [vmem:[%s1 + $0x38] sm:$0xf]
    %v57 = vld [vmem:[%s1 + $0x3c] sm:$0xf]
    %v58 = vld [vmem:[%s1 + $0x40] sm:$0xf]
    %v59 = vld [vmem:[%s1 + $0x44] sm:$0xf]
    %v60 = vld [vmem:[%s1 + $0x48] sm:$0xf]
    %v61 = vld [vmem:[%s1 + $0x4c] sm:$0xf]
    %v62 = vld [vmem:[%s1 + $0x50] sm:$0xf]
    %v63 = vld [vmem:[%s1 + $0x54] sm:$0xf]
    %v64 = vld [vmem:[%s1 + $0x58] sm:$0xf]
    %v65 = vld [vmem:[%s1 + $0x5c] sm:$0xf]
    %v66 = vld [vmem:[%s1 + $0x60] sm:$0xf]
    %v67 = vld [vmem:[%s1 + $0x64] sm:$0xf]
    %v68 = vld [vmem:[%s1 + $0x68] sm:$0xf]
    %v69 = vld [vmem:[%s1 + $0x6c] sm:$0xf]
    %v70 = vld [vmem:[%s1 + $0x70] sm:$0xf]
    %v71 = vld [vmem:[%s1 + $0x74] sm:$0xf]
    %v72 = vld [vmem:[%s1 + $0x78] sm:$0xf]
    %v73 = vld [vmem:[%s1 + $0x7c] sm:$0xf]
    %v74 = vld [vmem:[%s1 + $0x80] sm:$0xf]
    %v75 = vld [vmem:[%s1 + $0x84] sm:$0xf]
    %v76 = vld [vmem:[%s1 + $0x88] sm:$0xf]
    %v77 = vld [vmem:[%s1 + $0x8c] sm:$0xf]
    %v78 = vld [vmem:[%s1 + $0x90] sm:$0xf]
    %v79 = vld [vmem:[%s1 + $0x94] sm:$0xf]
    %v80 = vld [vmem:[%s1 + $0x98] sm:$0xf]
    %v81 = vld [vmem:[%s1 + $0x9c] sm:$0xf]
    %v82 = vld [vmem:[%s1 + $0xa0] sm:$0xf]
    %v83 = vld [vmem:[%s1 + $0xa4] sm:$0xf]
    %v84 = vld [vmem:[%s1 + $0xa8] sm:$0xf]
    %v85 = vld [vmem:[%s1 + $0xac] sm:$0xf]
    %v86 = vld [vmem:[%s1 + $0xb0] sm:$0xf]
    %v87 = vld [vmem:[%s1 + $0xb4] sm:$0xf]
    %v88 = vld [vmem:[%s1 + $0xb8] sm:$0xf]
    %v89 = vld [vmem:[%s1 + $0xbc] sm:$0xf]
    %v90 = vld [vmem:[%s1 + $0xc0] sm:$0xf]
    %v91 = vld [vmem:[%s1 + $0xc4] sm:$0xf]
    %v92 = vld [vmem:[%s1 + $0xc8] sm:$0xf]
    %v93 = vld [vmem:[%s1 + $0xcc] sm:$0xf]
    %v94 = vld [vmem:[%s1 + $0xd0] sm:$0xf]
    %v95 = vld [vmem:[%s1 + $0xd4] sm:$0xf]
    %v96 = vld [vmem:[%s1 + $0xd8] sm:$0xf]
    %v97 = vld [vmem:[%s1 + $0xdc] sm:$0xf]
    %v98 = vld [vmem:[%s1 + $0xe0] sm:$0xf]
    %v99 = vld [vmem:[%s1 + $0xe4] sm:$0xf]
    %v100 = vld [vmem:[%s1 + $0xe8] sm:$0xf]
    %v101 = vld [vmem:[%s1 + $0xec] sm:$0xf]
    %v102 = vld [vmem:[%s1 + $0xf0] sm:$0xf]
    %v103 = vld [vmem:[%s1 + $0xf4] sm:$0xf]
    %v104 = vld [vmem:[%s1 + $0xf8] sm:$0xf]
    %v105 = vld [vmem:[%s1 + $0xfc] sm:$0xf]
    %v106 = vld [vmem:[%s1 + $0x100] sm:$0xf]
    %v107 = vld [vmem:[%s1 + $0x104] sm:$0xf]
    %v108 = vld [vmem:[%s1 + $0x108] sm:$0xf]
    %v109 = vld [vmem:[%s1 + $0x10c] sm:$0xf]
    %v110 = vld [vmem:[%s1 + $0x110] sm:$0xf]
    %v111 = vld [vmem:[%s1 + $0x114] sm:$0xf]
    %v112 = vld [vmem:[%s1 + $0x118] sm:$0xf]
    %v113 = vld [vmem:[%s1 + $0x11c] sm:$0xf]
    %v114 = vld [vmem:[%s1 + $0x120] sm:$0xf]
    %v115 = vld [vmem:[%s1 + $0x124] sm:$0xf]
    %v116 = vld [vmem:[%s1 + $0x128] sm:$0xf]
    %v117 = vld [vmem:[%s1 + $0x12c] sm:$0xf]
    %v118 = vld [vmem:[%s1 + $0x130] sm:$0xf]
    %v119 = vld [vmem:[%s1 + $0x134] sm:$0xf]
    %v120 = vld [vmem:[%s1 + $0x138] sm:$0xf]
    %v121 = vld [vmem:[%s1 + $0x13c] sm:$0xf]
    %v122 = vld [vmem:[%s1 + $0x140] sm:$0xf]
    %v123 = vld [vmem:[%s1 + $0x144] sm:$0xf]
    %v124 = vld [vmem:[%s1 + $0x148] sm:$0xf]
    %v125 = vld [vmem:[%s1 + $0x14c] sm:$0xf]
    %v126 = vld [vmem:[%s1 + $0x150] sm:$0xf]
    %v127 = vld [vmem:[%s1 + $0x154] sm:$0xf]
    %v128 = vld [vmem:[%s1 + $0x158] sm:$0xf]
    %v129 = vld [vmem:[%s1 + $0x15c] sm:$0xf]
    %v130 = vld [vmem:[%s1 + $0x160] sm:$0xf]
    %v131 = vld [vmem:[%s1 + $0x164] sm:$0xf]
    %v132 = vld [vmem:[%s1 + $0x168] sm:$0xf]
    %v133 = vld [vmem:[%s1 + $0x16c] sm:$0xf]
    %v134 = vld [vmem:[%s1 + $0x170] sm:$0xf]
    %v135 = vld [vmem:[%s1 + $0x174] sm:$0xf]
    %v136 = vld [vmem:[%s1 + $0x178] sm:$0xf]
    %v137 = vld [vmem:[%s1 + $0x17c] sm:$0xf]
    %v138 = vld [vmem:[%s1 + $0x180] sm:$0xf]
    %v139 = vld [vmem:[%s1 + $0x184] sm:$0xf]
    %v140 = vld [vmem:[%s2] sm:$0x1]
    %v142 = vlaneseq
    %v143 = vshrl.u32 %v142, 7
    %v144 = vsub.s32 0, %v143
    %v145 = vrot.slane %v140, %v144
    %v245 = vunpack.c.l.b16 %v42
    %v246 = vunpack.c.l.b16 %v43
    %v247 = vunpack.c.l.b16 %v44
    %v248 = vunpack.c.l.b16 %v45
    %v249 = vunpack.c.l.b16 %v46
    %v250 = vunpack.c.l.b16 %v47
    %v251 = vunpack.c.l.b16 %v48
    %v252 = vunpack.c.l.b16 %v49
    %v253 = vunpack.c.l.b16 %v50
    %v254 = vunpack.c.l.b16 %v51
    %v255 = vunpack.c.l.b16 %v52
    %v256 = vunpack.c.l.b16 %v53
    %v257 = vunpack.c.l.b16 %v54
    %v258 = vunpack.c.l.b16 %v55
    %v259 = vunpack.c.l.b16 %v56
    %v260 = vunpack.c.l.b16 %v57
    %v261 = vunpack.c.l.b16 %v58
    %v262 = vunpack.c.l.b16 %v59
    %v263 = vunpack.c.l.b16 %v60
    %v264 = vunpack.c.l.b16 %v61
    %v265 = vunpack.c.l.b16 %v62
    %v266 = vunpack.c.l.b16 %v63
    %v267 = vunpack.c.l.b16 %v64
    %v268 = vunpack.c.l.b16 %v65
    %v269 = vunpack.c.l.b16 %v66
    %v270 = vunpack.c.l.b16 %v67
    %v271 = vunpack.c.l.b16 %v68
    %v272 = vunpack.c.l.b16 %v69
    %v273 = vunpack.c.l.b16 %v70
    %v274 = vunpack.c.l.b16 %v71
    %v275 = vunpack.c.l.b16 %v72
    %v276 = vunpack.c.l.b16 %v73
    %v277 = vunpack.c.l.b16 %v74
    %v278 = vunpack.c.l.b16 %v75
    %v279 = vunpack.c.l.b16 %v76
    %v280 = vunpack.c.l.b16 %v77
    %v281 = vunpack.c.l.b16 %v78
    %v282 = vunpack.c.l.b16 %v79
    %v283 = vunpack.c.l.b16 %v80
    %v284 = vunpack.c.l.b16 %v81
    %v285 = vunpack.c.l.b16 %v82
    %v286 = vunpack.c.l.b16 %v83
    %v287 = vunpack.c.l.b16 %v84
    %v288 = vunpack.c.l.b16 %v85
    %v289 = vunpack.c.l.b16 %v86
    %v290 = vunpack.c.l.b16 %v87
    %v291 = vunpack.c.l.b16 %v88
    %v292 = vunpack.c.l.b16 %v89
    %v293 = vunpack.c.l.b16 %v90
    %v294 = vunpack.c.l.b16 %v91
    %v295 = vunpack.c.l.b16 %v92
    %v296 = vunpack.c.l.b16 %v93
    %v297 = vunpack.c.l.b16 %v94
    %v298 = vunpack.c.l.b16 %v95
    %v299 = vunpack.c.l.b16 %v96
    %v300 = vunpack.c.l.b16 %v97
    %v301 = vunpack.c.l.b16 %v98
    %v302 = vunpack.c.l.b16 %v99
    %v303 = vunpack.c.l.b16 %v100
    %v304 = vunpack.c.l.b16 %v101
    %v305 = vunpack.c.l.b16 %v102
    %v306 = vunpack.c.l.b16 %v103
    %v307 = vunpack.c.l.b16 %v104
    %v308 = vunpack.c.l.b16 %v105
    %v309 = vunpack.c.l.b16 %v106
    %v310 = vunpack.c.l.b16 %v107
    %v311 = vunpack.c.l.b16 %v108
    %v312 = vunpack.c.l.b16 %v109
    %v313 = vunpack.c.l.b16 %v110
    %v314 = vunpack.c.l.b16 %v111
    %v315 = vunpack.c.l.b16 %v112
    %v316 = vunpack.c.l.b16 %v113
    %v317 = vunpack.c.l.b16 %v114
    %v318 = vunpack.c.l.b16 %v115
    %v319 = vunpack.c.l.b16 %v116
    %v320 = vunpack.c.l.b16 %v117
    %v321 = vunpack.c.l.b16 %v118
    %v322 = vunpack.c.l.b16 %v119
    %v323 = vunpack.c.l.b16 %v120
    %v324 = vunpack.c.l.b16 %v121
    %v325 = vunpack.c.l.b16 %v122
    %v326 = vunpack.c.l.b16 %v123
    %v327 = vunpack.c.l.b16 %v124
    %v328 = vunpack.c.l.b16 %v125
    %v329 = vunpack.c.l.b16 %v126
    %v330 = vunpack.c.l.b16 %v127
    %v331 = vunpack.c.l.b16 %v128
    %v332 = vunpack.c.l.b16 %v129
    %v333 = vunpack.c.l.b16 %v130
    %v334 = vunpack.c.l.b16 %v131
    %v335 = vunpack.c.l.b16 %v132
    %v336 = vunpack.c.l.b16 %v133
    %v337 = vunpack.c.l.b16 %v134
    %v338 = vunpack.c.l.b16 %v135
    %v339 = vunpack.c.l.b16 %v136
    %v340 = vunpack.c.l.b16 %v137
    %v341 = vunpack.c.l.b16 %v138
    %v342 = vunpack.c.l.b16 %v139
    %v343 = vpack.c.b16 %v246, %v245
    %v344 = vpack.c.b16 %v248, %v247
    %v345 = vpack.c.b16 %v250, %v249
    %v346 = vpack.c.b16 %v252, %v251
    %v347 = vpack.c.b16 %v254, %v253
    %v348 = vpack.c.b16 %v256, %v255
    %v349 = vpack.c.b16 %v258, %v257
    %v350 = vpack.c.b16 %v260, %v259
    %v351 = vpack.c.b16 %v262, %v261
    %v352 = vpack.c.b16 %v264, %v263
    %v353 = vpack.c.b16 %v266, %v265
    %v354 = vpack.c.b16 %v268, %v267
    %v355 = vpack.c.b16 %v270, %v269
    %v356 = vpack.c.b16 %v272, %v271
    %v357 = vpack.c.b16 %v274, %v273
    %v358 = vpack.c.b16 %v276, %v275
    %v359 = vpack.c.b16 %v278, %v277
    %v360 = vpack.c.b16 %v280, %v279
    %v361 = vpack.c.b16 %v282, %v281
    %v362 = vpack.c.b16 %v284, %v283
    %v363 = vpack.c.b16 %v286, %v285
    %v364 = vpack.c.b16 %v288, %v287
    %v365 = vpack.c.b16 %v290, %v289
    %v366 = vpack.c.b16 %v292, %v291
    %v367 = vpack.c.b16 %v294, %v293
    %v368 = vpack.c.b16 %v296, %v295
    %v369 = vpack.c.b16 %v298, %v297
    %v370 = vpack.c.b16 %v300, %v299
    %v371 = vpack.c.b16 %v302, %v301
    %v372 = vpack.c.b16 %v304, %v303
    %v373 = vpack.c.b16 %v306, %v305
    %v374 = vpack.c.b16 %v308, %v307
    %v375 = vpack.c.b16 %v310, %v309
    %v376 = vpack.c.b16 %v312, %v311
    %v377 = vpack.c.b16 %v314, %v313
    %v378 = vpack.c.b16 %v316, %v315
    %v379 = vpack.c.b16 %v318, %v317
    %v380 = vpack.c.b16 %v320, %v319
    %v381 = vpack.c.b16 %v322, %v321
    %v382 = vpack.c.b16 %v324, %v323
    %v383 = vpack.c.b16 %v326, %v325
    %v384 = vpack.c.b16 %v328, %v327
    %v385 = vpack.c.b16 %v330, %v329
    %v386 = vpack.c.b16 %v332, %v331
    %v387 = vpack.c.b16 %v334, %v333
    %v388 = vpack.c.b16 %v336, %v335
    %v389 = vpack.c.b16 %v338, %v337
    %v390 = vpack.c.b16 %v340, %v339
    %v391 = vpack.c.b16 %v342, %v341
    %vm441 = vcmask 130048
    %v443 = vsel %vm441, %v41, 0
    %445 = vmatprep.subr.bf16.mxu0 0
    %446 = vmatpush1.bf16.msra.mxu0 %v343
    %447 = vmatprep.subr.bf16.mxu0 0
    %448 = vmatpush1.bf16.msra.mxu0 %v344
    %449 = vmatprep.subr.bf16.mxu0 0
    %450 = vmatpush1.bf16.msra.mxu0 %v345
    %451 = vmatprep.subr.bf16.mxu0 0
    %452 = vmatpush1.bf16.msra.mxu0 %v346
    %453 = vmatprep.subr.bf16.mxu0 0
    %454 = vmatpush1.bf16.msra.mxu0 %v347
    %455 = vmatprep.subr.bf16.mxu0 0
    %456 = vmatpush1.bf16.msra.mxu0 %v348
    %457 = vmatprep.subr.bf16.mxu0 0
    %458 = vmatpush1.bf16.msra.mxu0 %v349
    %459 = vmatprep.subr.bf16.mxu0 0
    %460 = vmatpush1.bf16.msra.mxu0 %v350
    %461 = vmatprep.subr.bf16.mxu0 0
    %462 = vmatpush1.bf16.msra.mxu0 %v351
    %463 = vmatprep.subr.bf16.mxu0 0
    %464 = vmatpush1.bf16.msra.mxu0 %v352
    %465 = vmatprep.subr.bf16.mxu0 0
    %466 = vmatpush1.bf16.msra.mxu0 %v353
    %467 = vmatprep.subr.bf16.mxu0 0
    %468 = vmatpush1.bf16.msra.mxu0 %v354
    %469 = vmatprep.subr.bf16.mxu0 0
    %470 = vmatpush1.bf16.msra.mxu0 %v355
    %471 = vmatprep.subr.bf16.mxu0 0
    %472 = vmatpush1.bf16.msra.mxu0 %v356
    %473 = vmatprep.subr.bf16.mxu0 0
    %474 = vmatpush1.bf16.msra.mxu0 %v357
    %475 = vmatprep.subr.bf16.mxu0 0
    %476 = vmatpush1.bf16.msra.mxu0 %v358
    %477 = vmatprep.mubr.bf16.mxu0 %v36
    %478 = vmatmul.mubr.bf16.gmra.mrb[0].mxu0 %v35
    %v479 = vpop.f32.mrb[0].mxu0
    %v480 = vadd.f32 %v145, %v479
    %v481 = vpop.f32.mrb[0].mxu0
    %v482 = vpop.f32.mrb[0].mxu0
    %v483 = vpop.f32.mrb[0].mxu0
    %484 = vdwg.mxu0
    %485 = vmatprep.subr.bf16.mxu0 0
    %486 = vmatpush1.bf16.msra.mxu0 %v359
    %487 = vmatprep.subr.bf16.mxu0 0
    %488 = vmatpush1.bf16.msra.mxu0 %v360
    %489 = vmatprep.subr.bf16.mxu0 0
    %490 = vmatpush1.bf16.msra.mxu0 %v361
    %491 = vmatprep.subr.bf16.mxu0 0
    %492 = vmatpush1.bf16.msra.mxu0 %v362
    %493 = vmatprep.subr.bf16.mxu0 0
    %494 = vmatpush1.bf16.msra.mxu0 %v363
    %495 = vmatprep.subr.bf16.mxu0 0
    %496 = vmatpush1.bf16.msra.mxu0 %v364
    %497 = vmatprep.subr.bf16.mxu0 0
    %498 = vmatpush1.bf16.msra.mxu0 %v365
    %499 = vmatprep.subr.bf16.mxu0 0
    %500 = vmatpush1.bf16.msra.mxu0 %v366
    %501 = vmatprep.subr.bf16.mxu0 0
    %502 = vmatpush1.bf16.msra.mxu0 %v367
    %503 = vmatprep.subr.bf16.mxu0 0
    %504 = vmatpush1.bf16.msra.mxu0 %v368
    %505 = vmatprep.subr.bf16.mxu0 0
    %506 = vmatpush1.bf16.msra.mxu0 %v369
    %507 = vmatprep.subr.bf16.mxu0 0
    %508 = vmatpush1.bf16.msra.mxu0 %v370
    %509 = vmatprep.subr.bf16.mxu0 0
    %510 = vmatpush1.bf16.msra.mxu0 %v371
    %511 = vmatprep.subr.bf16.mxu0 0
    %512 = vmatpush1.bf16.msra.mxu0 %v372
    %513 = vmatprep.subr.bf16.mxu0 0
    %514 = vmatpush1.bf16.msra.mxu0 %v373
    %515 = vmatprep.subr.bf16.mxu0 0
    %516 = vmatpush1.bf16.msra.mxu0 %v374
    %517 = vmatprep.mubr.bf16.mxu0 %v38
    %518 = vmatmul.mubr.bf16.gmra.mrb[0].mxu0 %v37
    %v519 = vpop.f32.mrb[0].mxu0
    %v520 = vadd.f32 %v480, %v519
    %v521 = vpop.f32.mrb[0].mxu0
    %v522 = vpop.f32.mrb[0].mxu0
    %v523 = vpop.f32.mrb[0].mxu0
    %524 = vdwg.mxu0
    %525 = vmatprep.subr.bf16.mxu0 0
    %526 = vmatpush1.bf16.msra.mxu0 %v375
    %527 = vmatprep.subr.bf16.mxu0 0
    %528 = vmatpush1.bf16.msra.mxu0 %v376
    %529 = vmatprep.subr.bf16.mxu0 0
    %530 = vmatpush1.bf16.msra.mxu0 %v377
    %531 = vmatprep.subr.bf16.mxu0 0
    %532 = vmatpush1.bf16.msra.mxu0 %v378
    %533 = vmatprep.subr.bf16.mxu0 0
    %534 = vmatpush1.bf16.msra.mxu0 %v379
    %535 = vmatprep.subr.bf16.mxu0 0
    %536 = vmatpush1.bf16.msra.mxu0 %v380
    %537 = vmatprep.subr.bf16.mxu0 0
    %538 = vmatpush1.bf16.msra.mxu0 %v381
    %539 = vmatprep.subr.bf16.mxu0 0
    %540 = vmatpush1.bf16.msra.mxu0 %v382
    %541 = vmatprep.subr.bf16.mxu0 0
    %542 = vmatpush1.bf16.msra.mxu0 %v383
    %543 = vmatprep.subr.bf16.mxu0 0
    %544 = vmatpush1.bf16.msra.mxu0 %v384
    %545 = vmatprep.subr.bf16.mxu0 0
    %546 = vmatpush1.bf16.msra.mxu0 %v385
    %547 = vmatprep.subr.bf16.mxu0 0
    %548 = vmatpush1.bf16.msra.mxu0 %v386
    %549 = vmatprep.subr.bf16.mxu0 0
    %550 = vmatpush1.bf16.msra.mxu0 %v387
    %551 = vmatprep.subr.bf16.mxu0 0
    %552 = vmatpush1.bf16.msra.mxu0 %v388
    %553 = vmatprep.subr.bf16.mxu0 0
    %554 = vmatpush1.bf16.msra.mxu0 %v389
    %555 = vmatprep.subr.bf16.mxu0 0
    %556 = vmatpush1.bf16.msra.mxu0 %v390
    %557 = vmatprep.mubr.bf16.mxu0 %v40
    %558 = vmatmul.mubr.bf16.gmra.mrb[0].mxu0 %v39
    %v559 = vpop.f32.mrb[0].mxu0
    %v560 = vadd.f32 %v520, %v559
    %v561 = vpop.f32.mrb[0].mxu0
    %v562 = vpop.f32.mrb[0].mxu0
    %v563 = vpop.f32.mrb[0].mxu0
    %564 = vdwg.mxu0
    %565 = vmatprep.subr.bf16.mxu0 0
    %566 = vmatpush1.bf16.msra.mxu0 %v391
    %567 = vmatprep.subr.bf16.mxu0 0
    %568 = vmatpush1.bf16.msra.mxu0 0
    %569 = vmatprep.subr.bf16.mxu0 0
    %570 = vmatpush1.bf16.msra.mxu0 0
    %571 = vmatprep.subr.bf16.mxu0 0
    %572 = vmatpush1.bf16.msra.mxu0 0
    %573 = vmatprep.subr.bf16.mxu0 0
    %574 = vmatpush1.bf16.msra.mxu0 0
    %575 = vmatprep.subr.bf16.mxu0 0
    %576 = vmatpush1.bf16.msra.mxu0 0
    %577 = vmatprep.subr.bf16.mxu0 0
    %578 = vmatpush1.bf16.msra.mxu0 0
    %579 = vmatprep.subr.bf16.mxu0 0
    %580 = vmatpush1.bf16.msra.mxu0 0
    %581 = vmatprep.subr.bf16.mxu0 0
    %582 = vmatpush1.bf16.msra.mxu0 0
    %583 = vmatprep.subr.bf16.mxu0 0
    %584 = vmatpush1.bf16.msra.mxu0 0
    %585 = vmatprep.subr.bf16.mxu0 0
    %586 = vmatpush1.bf16.msra.mxu0 0
    %587 = vmatprep.subr.bf16.mxu0 0
    %588 = vmatpush1.bf16.msra.mxu0 0
    %589 = vmatprep.subr.bf16.mxu0 0
    %590 = vmatpush1.bf16.msra.mxu0 0
    %591 = vmatprep.subr.bf16.mxu0 0
    %592 = vmatpush1.bf16.msra.mxu0 0
    %593 = vmatprep.subr.bf16.mxu0 0
    %594 = vmatpush1.bf16.msra.mxu0 0
    %595 = vmatprep.subr.bf16.mxu0 0
    %596 = vmatpush1.bf16.msra.mxu0 0
    %597 = vmatprep.mubr.bf16.mxu0 0
    %598 = vmatmul.mubr.bf16.gmra.mrb[0].mxu0 %v443
    %v599 = vpop.f32.mrb[0].mxu0
    %v600 = vadd.f32 %v560, %v599
    %v601 = vpop.f32.mrb[0].mxu0
    %v602 = vpop.f32.mrb[0].mxu0
    %v603 = vpop.f32.mrb[0].mxu0
    %604 = vdwg.mxu0
    %v605 = vtanh.pop %v600
    %v606 = vpack.c.bf16 %v605, %v605
    %v607 = vld [vmem:[%s3] sm:$0xf]
    %v608 = vld [vmem:[%s3 + $0x4] sm:$0xf]
    %v609 = vld [vmem:[%s3 + $0x8] sm:$0xf]
    %v610 = vld [vmem:[%s3 + $0xc] sm:$0xf]
    %v611 = vld [vmem:[%s3 + $0x10] sm:$0xf]
    %v612 = vld [vmem:[%s3 + $0x14] sm:$0xf]
    %v613 = vld [vmem:[%s3 + $0x18] sm:$0xf]
    %v614 = vld [vmem:[%s3 + $0x1c] sm:$0xf]
    %v615 = vld [vmem:[%s3 + $0x20] sm:$0xf]
    %v616 = vld [vmem:[%s3 + $0x24] sm:$0xf]
    %v617 = vld [vmem:[%s3 + $0x28] sm:$0xf]
    %v618 = vld [vmem:[%s3 + $0x2c] sm:$0xf]
    %v619 = vld [vmem:[%s3 + $0x30] sm:$0xf]
    %v620 = vld [vmem:[%s3 + $0x34] sm:$0xf]
    %v621 = vld [vmem:[%s3 + $0x38] sm:$0xf]
    %v622 = vld [vmem:[%s3 + $0x3c] sm:$0xf]
    %v623 = vld [vmem:[%s4] sm:$0x1]
    %v625 = vlaneseq
    %v626 = vshrl.u32 %v625, 7
    %v627 = vsub.s32 0, %v626
    %v628 = vrot.slane %v623, %v627
    %v646 = vunpack.c.l.b16 %v607
    %v647 = vunpack.c.l.b16 %v608
    %v648 = vunpack.c.l.b16 %v609
    %v649 = vunpack.c.l.b16 %v610
    %v650 = vunpack.c.l.b16 %v611
    %v651 = vunpack.c.l.b16 %v612
    %v652 = vunpack.c.l.b16 %v613
    %v653 = vunpack.c.l.b16 %v614
    %v654 = vunpack.c.l.b16 %v615
    %v655 = vunpack.c.l.b16 %v616
    %v656 = vunpack.c.l.b16 %v617
    %v657 = vunpack.c.l.b16 %v618
    %v658 = vunpack.c.l.b16 %v619
    %v659 = vunpack.c.l.b16 %v620
    %v660 = vunpack.c.l.b16 %v621
    %v661 = vunpack.c.l.b16 %v622
    %v662 = vpack.c.b16 %v647, %v646
    %v663 = vpack.c.b16 %v649, %v648
    %v664 = vpack.c.b16 %v651, %v650
    %v665 = vpack.c.b16 %v653, %v652
    %v666 = vpack.c.b16 %v655, %v654
    %v667 = vpack.c.b16 %v657, %v656
    %v668 = vpack.c.b16 %v659, %v658
    %v669 = vpack.c.b16 %v661, %v660
    %678 = vmatprep.subr.bf16.mxu0 0
    %679 = vmatpush1.bf16.msra.mxu0 %v662
    %680 = vmatprep.subr.bf16.mxu0 0
    %681 = vmatpush1.bf16.msra.mxu0 %v663
    %682 = vmatprep.subr.bf16.mxu0 0
    %683 = vmatpush1.bf16.msra.mxu0 %v664
    %684 = vmatprep.subr.bf16.mxu0 0
    %685 = vmatpush1.bf16.msra.mxu0 %v665
    %686 = vmatprep.subr.bf16.mxu0 0
    %687 = vmatpush1.bf16.msra.mxu0 %v666
    %688 = vmatprep.subr.bf16.mxu0 0
    %689 = vmatpush1.bf16.msra.mxu0 %v667
    %690 = vmatprep.subr.bf16.mxu0 0
    %691 = vmatpush1.bf16.msra.mxu0 %v668
    %692 = vmatprep.subr.bf16.mxu0 0
    %693 = vmatpush1.bf16.msra.mxu0 %v669
    %694 = vmatprep.subr.bf16.mxu0 0
    %695 = vmatpush1.bf16.msra.mxu0 0
    %696 = vmatprep.subr.bf16.mxu0 0
    %697 = vmatpush1.bf16.msra.mxu0 0
    %698 = vmatprep.subr.bf16.mxu0 0
    %699 = vmatpush1.bf16.msra.mxu0 0
    %700 = vmatprep.subr.bf16.mxu0 0
    %701 = vmatpush1.bf16.msra.mxu0 0
    %702 = vmatprep.subr.bf16.mxu0 0
    %703 = vmatpush1.bf16.msra.mxu0 0
    %704 = vmatprep.subr.bf16.mxu0 0
    %705 = vmatpush1.bf16.msra.mxu0 0
    %706 = vmatprep.subr.bf16.mxu0 0
    %707 = vmatpush1.bf16.msra.mxu0 0
    %708 = vmatprep.subr.bf16.mxu0 0
    %709 = vmatpush1.bf16.msra.mxu0 0
    %710 = vmatprep.mubr.bf16.mxu0 0
    %711 = vmatmul.mubr.bf16.gmra.mrb[0].mxu0 %v606
    %v712 = vpop.f32.mrb[0].mxu0
    %v713 = vadd.f32 %v628, %v712
    %v714 = vpop.f32.mrb[0].mxu0
    %v715 = vpop.f32.mrb[0].mxu0
    %v716 = vpop.f32.mrb[0].mxu0
    %717 = vdwg.mxu0
    %v718 = vsub.f32 0.0, %v713
    %v719 = vmul.f32 %v718, 1.442695
    %v720 = vpow.pop %v719
    %v721 = vadd.f32 %v720, 1.0
    %v722 = vrcp.pop %v721
    %v723 = vmul.f32 %v605, %v722
    %724 = vadd.xlane.f32.xlu0 %v723
    %v725 = vpop.xlane.xlu0 %724
    %v726 = vmul.f32 %v605, %v605
    %727 = vadd.xlane.f32.xlu0 %v726
    %v728 = vpop.xlane.xlu0 %727
    %v729 = vmul.f32 %v722, %v722
    %730 = vadd.xlane.f32.xlu0 %v729
    %v731 = vpop.xlane.xlu0 %730
    %v732 = vmul.f32 %v725, 0.002
    %v733 = vadd.f32 %v732, 1.0
    %v734 = vmul.f32 %v728, 1e-06
    %v735 = vmul.f32 %v734, %v731
    %v736 = vadd.f32 %v733, %v735
    %v737 = vrcp.pop %v736
    %v738 = vmul.f32 %v731, 0.001
    %v739 = vadd.f32 %v733, %v738
    %v740 = vmul.f32 %v739, 0.7
    %v741 = vmul.f32 %v740, %v737
    %v742 = vadd.f32 %v741, 0.3
    %v743 = vmul.f32 %v728, 0.001
    %v744 = vsub.f32 1.0, %v743
    %v745 = vmul.f32 %v744, 0.7
    %v746 = vmul.f32 %v745, %v737
    %v747 = vmul.f32 %v742, %v605
    %v748 = vmul.f32 %v746, %v722
    %v749 = vadd.f32 %v747, %v748
    %vm750 = vcmp.ne.f32.partialorder %v742, %v742
    %v751 = vsel %vm750, 1.0, 0.0
    %v752 = vrot.slane %v751, 4
    %v753 = vmax.f32 %v751, %v752
    %v754 = vrot.slane %v753, 2
    %v755 = vmax.f32 %v753, %v754
    %v756 = vrot.slane %v755, 1
    %v757 = vmax.f32 %v755, %v756
    %s758 = vtos %v757
    %p759 = scmp.gt.f32.partialorder %s758, 0.0
    %vm760 = vcmp.ne.f32.partialorder %v746, %v746
    %v761 = vsel %vm760, 1.0, 0.0
    %v762 = vrot.slane %v761, 4
    %v763 = vmax.f32 %v761, %v762
    %v764 = vrot.slane %v763, 2
    %v765 = vmax.f32 %v763, %v764
    %v766 = vrot.slane %v765, 1
    %v767 = vmax.f32 %v765, %v766
    %s768 = vtos %v767
    %p769 = scmp.gt.f32.partialorder %s768, 0.0
    %p770 = por %p759, %p769
    %s771 = scalar_select %p770, 1, 0
    %v772 = vstv %s771
    %vm773 = vcmp.eq.s32.totalorder %v772, 1
    %v774 = vsel %vm773, %v605, %v749
    %v775 = vpack.c.bf16 %v774, %v774
    %v776 = vld [vmem:[%s5] sm:$0xf]
    %v777 = vld [vmem:[%s5 + $0x4] sm:$0xf]
    %v778 = vld [vmem:[%s5 + $0x8] sm:$0xf]
    %v779 = vld [vmem:[%s5 + $0xc] sm:$0xf]
    %v780 = vld [vmem:[%s5 + $0x10] sm:$0xf]
    %v781 = vld [vmem:[%s5 + $0x14] sm:$0xf]
    %v782 = vld [vmem:[%s5 + $0x18] sm:$0xf]
    %v783 = vld [vmem:[%s5 + $0x1c] sm:$0xf]
    %v784 = vld [vmem:[%s5 + $0x20] sm:$0xf]
    %v785 = vld [vmem:[%s5 + $0x24] sm:$0xf]
    %v786 = vld [vmem:[%s5 + $0x28] sm:$0xf]
    %v787 = vld [vmem:[%s5 + $0x2c] sm:$0xf]
    %v788 = vld [vmem:[%s5 + $0x30] sm:$0xf]
    %v789 = vld [vmem:[%s5 + $0x34] sm:$0xf]
    %v790 = vld [vmem:[%s5 + $0x38] sm:$0xf]
    %v791 = vld [vmem:[%s5 + $0x3c] sm:$0xf]
    %v792 = vld [vmem:[%s6] sm:$0x1]
    %v794 = vlaneseq
    %v795 = vshrl.u32 %v794, 7
    %v796 = vsub.s32 0, %v795
    %v797 = vrot.slane %v792, %v796
    %v815 = vunpack.c.l.b16 %v776
    %v816 = vunpack.c.l.b16 %v777
    %v817 = vunpack.c.l.b16 %v778
    %v818 = vunpack.c.l.b16 %v779
    %v819 = vunpack.c.l.b16 %v780
    %v820 = vunpack.c.l.b16 %v781
    %v821 = vunpack.c.l.b16 %v782
    %v822 = vunpack.c.l.b16 %v783
    %v823 = vunpack.c.l.b16 %v784
    %v824 = vunpack.c.l.b16 %v785
    %v825 = vunpack.c.l.b16 %v786
    %v826 = vunpack.c.l.b16 %v787
    %v827 = vunpack.c.l.b16 %v788
    %v828 = vunpack.c.l.b16 %v789
    %v829 = vunpack.c.l.b16 %v790
    %v830 = vunpack.c.l.b16 %v791
    %v831 = vpack.c.b16 %v816, %v815
    %v832 = vpack.c.b16 %v818, %v817
    %v833 = vpack.c.b16 %v820, %v819
    %v834 = vpack.c.b16 %v822, %v821
    %v835 = vpack.c.b16 %v824, %v823
    %v836 = vpack.c.b16 %v826, %v825
    %v837 = vpack.c.b16 %v828, %v827
    %v838 = vpack.c.b16 %v830, %v829
    %847 = vmatprep.subr.bf16.mxu0 0
    %848 = vmatpush1.bf16.msra.mxu0 %v831
    %849 = vmatprep.subr.bf16.mxu0 0
    %850 = vmatpush1.bf16.msra.mxu0 %v832
    %851 = vmatprep.subr.bf16.mxu0 0
    %852 = vmatpush1.bf16.msra.mxu0 %v833
    %853 = vmatprep.subr.bf16.mxu0 0
    %854 = vmatpush1.bf16.msra.mxu0 %v834
    %855 = vmatprep.subr.bf16.mxu0 0
    %856 = vmatpush1.bf16.msra.mxu0 %v835
    %857 = vmatprep.subr.bf16.mxu0 0
    %858 = vmatpush1.bf16.msra.mxu0 %v836
    %859 = vmatprep.subr.bf16.mxu0 0
    %860 = vmatpush1.bf16.msra.mxu0 %v837
    %861 = vmatprep.subr.bf16.mxu0 0
    %862 = vmatpush1.bf16.msra.mxu0 %v838
    %863 = vmatprep.subr.bf16.mxu0 0
    %864 = vmatpush1.bf16.msra.mxu0 0
    %865 = vmatprep.subr.bf16.mxu0 0
    %866 = vmatpush1.bf16.msra.mxu0 0
    %867 = vmatprep.subr.bf16.mxu0 0
    %868 = vmatpush1.bf16.msra.mxu0 0
    %869 = vmatprep.subr.bf16.mxu0 0
    %870 = vmatpush1.bf16.msra.mxu0 0
    %871 = vmatprep.subr.bf16.mxu0 0
    %872 = vmatpush1.bf16.msra.mxu0 0
    %873 = vmatprep.subr.bf16.mxu0 0
    %874 = vmatpush1.bf16.msra.mxu0 0
    %875 = vmatprep.subr.bf16.mxu0 0
    %876 = vmatpush1.bf16.msra.mxu0 0
    %877 = vmatprep.subr.bf16.mxu0 0
    %878 = vmatpush1.bf16.msra.mxu0 0
    %879 = vmatprep.mubr.bf16.mxu0 0
    %880 = vmatmul.mubr.bf16.gmra.mrb[0].mxu0 %v775
    %v881 = vpop.f32.mrb[0].mxu0
    %v882 = vadd.f32 %v797, %v881
    %v883 = vpop.f32.mrb[0].mxu0
    %v884 = vpop.f32.mrb[0].mxu0
    %v885 = vpop.f32.mrb[0].mxu0
    %886 = vdwg.mxu0
    %887 = vst [vmem:[#allocation2] sm:$0xff] %v882
    // Predicated region
    $region30: #{conditional_chebyshev_mlp.1} parent=1 // pred_check
      _
    $region31: #{conditional_chebyshev_mlp.1} parent=1 // pred_check_branch
      %889 = sbr.rel (0) target = $region33
    $region32: #{conditional_chebyshev_mlp.1} parent=1 // pred_region
      %s891 = ssub.s32 128, 128
      %892 = vsyncadd [#allocation3], %s891
      %s894 = sshll.u32 [#allocation2], 4
      %s895 = int_to_ptr.vmem [resolvable:$true] %s894
      %897 = dma.vmem_to_hbm [thread:$0]  %s895, 128, %s7, [#allocation3]
    $region33: #{conditional_chebyshev_mlp.1} parent=1 // pred_fallthru
      _
    // Predicated region
    $region34: #{conditional_chebyshev_mlp.1} parent=1 // pred_check
      _
    $region35: #{conditional_chebyshev_mlp.1} parent=1 // pred_check_branch
      %899 = sbr.rel (0) target = $region37
    $region36: #{conditional_chebyshev_mlp.1} parent=1 // pred_region
      %900 = dma.done [#allocation3], 128
    $region37: #{conditional_chebyshev_mlp.1} parent=1 // pred_fallthru
      _
    %901 = vsyncpa [#allocation3], 1

</llo_original>
